<compile_context>
chip_gen: v6e
topology: v6e:2x2x1
jax: 0.10.0
libtpu: 0.0.40
codegen_flags: <defaults>
</compile_context>

<pallas_src>
import functools

import jax
import jax.numpy as jnp
from jax.experimental import pallas as pl
from jax.experimental.pallas import tpu as pltpu


READSIZE = 32
HIDDEN = 64
HSIZE = 4
RESOLUTION = 1
FLATRES = HSIZE + READSIZE * RESOLUTION  # 36

MAX_TILE_B = 1024  # rows per grid step; sized well under scoped VMEM on all chips


def _round_up(n, m):
    return ((n + m - 1) // m) * m


def readnet_kernel(h_ref, r_ref, w1h_ref, w1r_ref, b1_ref, w2_ref, b2_ref, o_ref):
    """Linear(36,64) -> ReLU -> Linear(64,32) -> Tanh for one batch tile.

    Concat-free first layer: x @ W1 == h @ W1[:4, :] + r @ W1[4:, :].
    Matmul operands are bf16 (halved DMA); accumulation and elementwise work
    (bias add, ReLU, Tanh) are f32.
    """
    h_in = h_ref[...]                                            # (tile, 4)  bf16
    r_in = r_ref[...]                                            # (tile, 32) bf16
    acc = jnp.dot(h_in, w1h_ref[...], preferred_element_type=jnp.float32)
    acc = acc + jnp.dot(r_in, w1r_ref[...], preferred_element_type=jnp.float32)
    hid = jnp.maximum(acc + b1_ref[...], 0.0)                    # (tile, 64) f32
    y = jnp.dot(hid.astype(jnp.bfloat16), w2_ref[...],
                preferred_element_type=jnp.float32)
    o_ref[...] = jnp.tanh(y + b2_ref[...])                       # (tile, 32) f32


@jax.jit
def readnet_mlp(h_flat, r_flat, w1, b1, w2, b2):
    """Runs the 2-layer MLP on h_flat (B, 4) and r_flat (B, 32) -> (B, 32)."""
    B = h_flat.shape[0]
    tile = min(MAX_TILE_B, _round_up(max(B, 1), 8))
    b_pad = _round_up(max(B, 1), tile)
    grid = (b_pad // tile,)

    # bf16 storage for matmul operands; f32 accumulation happens in-kernel.
    h_bf = jnp.pad(h_flat, ((0, b_pad - B), (0, 0))).astype(jnp.bfloat16)
    r_bf = jnp.pad(r_flat, ((0, b_pad - B), (0, 0))).astype(jnp.bfloat16)
    w1h = w1[:HSIZE, :].astype(jnp.bfloat16)        # (4, 64)
    w1r = w1[HSIZE:, :].astype(jnp.bfloat16)        # (32, 64)
    w2_bf = w2.astype(jnp.bfloat16)                 # (64, 32)

    out = pl.pallas_call(
        readnet_kernel,
        out_shape=jax.ShapeDtypeStruct((b_pad, READSIZE), jnp.float32),
        grid=grid,
        in_specs=[
            pl.BlockSpec((tile, HSIZE), lambda i: (i, 0)),       # h tile
            pl.BlockSpec((tile, READSIZE), lambda i: (i, 0)),    # r tile
            pl.BlockSpec((HSIZE, HIDDEN), lambda i: (0, 0)),     # w1[:4]  (pinned)
            pl.BlockSpec((READSIZE, HIDDEN), lambda i: (0, 0)),  # w1[4:]  (pinned)
            pl.BlockSpec((1, HIDDEN), lambda i: (0, 0)),         # b1      (pinned)
            pl.BlockSpec((HIDDEN, READSIZE), lambda i: (0, 0)),  # w2      (pinned)
            pl.BlockSpec((1, READSIZE), lambda i: (0, 0)),       # b2      (pinned)
        ],
        out_specs=pl.BlockSpec((tile, READSIZE), lambda i: (i, 0)),
        compiler_params=pltpu.CompilerParams(
            dimension_semantics=("parallel",)),
    )(h_bf, r_bf, w1h, w1r, b1, w2_bf, b2)
    return out[:B]


def readnet_forward(h_self, r_children, params):
    """Glue replicating the PyTorch view/stack/cat logic; MLP runs in Pallas."""
    w1, b1, w2, b2 = params
    r = jnp.stack(r_children)
    if h_self.ndim <= 2:
        h_flat = h_self.reshape(1, -1)                  # (1, hsize)
        r_flat = r.reshape(1, -1)                       # (1, readsize)
        return readnet_mlp(h_flat, r_flat, w1, b1, w2, b2)[0]
    h_flat = h_self.reshape(h_self.shape[0], -1)        # (B, hsize)
    r_flat = r.reshape(r.shape[0], -1)                  # (B, readsize)
    return readnet_mlp(h_flat, r_flat, w1, b1, w2, b2)


def init_params(key):
    """Deterministic init mimicking PyTorch Linear (uniform +/- 1/sqrt(fan_in))."""
    k1, k2, k3, k4 = jax.random.split(key, 4)
    bound1 = 1.0 / jnp.sqrt(FLATRES)
    bound2 = 1.0 / jnp.sqrt(HIDDEN)
    w1 = jax.random.uniform(k1, (FLATRES, HIDDEN), jnp.float32, -bound1, bound1)
    b1 = jax.random.uniform(k2, (1, HIDDEN), jnp.float32, -bound1, bound1)
    w2 = jax.random.uniform(k3, (HIDDEN, READSIZE), jnp.float32, -bound2, bound2)
    b2 = jax.random.uniform(k4, (1, READSIZE), jnp.float32, -bound2, bound2)
    return w1, b1, w2, b2


def _ref_f32(h_flat, r_flat, w1, b1, w2, b2):
    """Pure-f32 reference (matches original PyTorch math)."""
    hp = jax.lax.Precision.HIGHEST
    x = jnp.concatenate([h_flat, r_flat], -1)
    h = jnp.maximum(jnp.dot(x, w1, precision=hp) + b1, 0.0)
    return jnp.tanh(jnp.dot(h, w2, precision=hp) + b2)


def _ref_bf16(h_flat, r_flat, w1, b1, w2, b2):
    """Reference matching the kernel's bf16-operand / f32-accumulate scheme."""
    hp = jax.lax.Precision.HIGHEST
    q = lambda a: a.astype(jnp.bfloat16).astype(jnp.float32)
    acc = (jnp.dot(q(h_flat), q(w1[:HSIZE]), precision=hp)
           + jnp.dot(q(r_flat), q(w1[HSIZE:]), precision=hp) + b1)
    hid = jnp.maximum(acc, 0.0)
    return jnp.tanh(jnp.dot(q(hid), q(w2), precision=hp) + b2)


if __name__ == "__main__":
    key = jax.random.PRNGKey(0)
    kp, kh, kr = jax.random.split(key, 3)
    params = init_params(kp)
    w1, b1, w2, b2 = params

    # Batched case: h_self is 3-D -> (batch, -1) flattening branch.
    B = 8
    h_self = jax.random.normal(kh, (B, 1, HSIZE), jnp.float32)
    r_keys = jax.random.split(kr, B)
    r_children = [jax.random.normal(r_keys[i], (READSIZE,), jnp.float32)
                  for i in range(B)]
    out = jax.block_until_ready(readnet_forward(h_self, r_children, params))
    assert out.shape == (B, READSIZE), out.shape

    h_flat = h_self.reshape(B, -1)
    r_flat = jnp.stack(r_children).reshape(B, -1)
    ref_q = _ref_bf16(h_flat, r_flat, w1, b1, w2, b2)
    ref_full = _ref_f32(h_flat, r_flat, w1, b1, w2, b2)
    assert jnp.allclose(out, ref_q, atol=1e-4), float(jnp.abs(out - ref_q).max())
    assert jnp.allclose(out, ref_full, atol=2e-2), float(jnp.abs(out - ref_full).max())

    # Unbatched case: h_self ndim <= 2 -> full flatten branch.
    out1 = jax.block_until_ready(
        readnet_forward(h_self[0], [r_children[0]], params))
    assert out1.shape == (READSIZE,), out1.shape
    assert jnp.allclose(out1, ref_q[0], atol=1e-4)

    # Multi-tile grid case (exercises batch tiling + padding path).
    BB = 2050
    kh2, kr2 = jax.random.split(jax.random.PRNGKey(1))
    h_big = jax.random.normal(kh2, (BB, HSIZE), jnp.float32)
    r_big = jax.random.normal(kr2, (BB, READSIZE), jnp.float32)
    out_big = jax.block_until_ready(readnet_mlp(h_big, r_big, w1, b1, w2, b2))
    assert out_big.shape == (BB, READSIZE), out_big.shape
    ref_big = _ref_bf16(h_big, r_big, w1, b1, w2, b2)
    assert jnp.allclose(out_big, ref_big, atol=1e-4), \
        float(jnp.abs(out_big - ref_big).max())

    print("KERNEL_OK")
</pallas_src>

<mosaic_0001>
module attributes {stable_mosaic.version = 11 : i64} {
  func.func @readnet_kernel(%arg0: i32, %arg1: memref<8x4xbf16, #tpu.memory_space<vmem>>, %arg2: memref<8x32xbf16, #tpu.memory_space<vmem>>, %arg3: memref<4x64xbf16, #tpu.memory_space<vmem>>, %arg4: memref<32x64xbf16, #tpu.memory_space<vmem>>, %arg5: memref<1x64xf32, #tpu.memory_space<vmem>>, %arg6: memref<64x32xbf16, #tpu.memory_space<vmem>>, %arg7: memref<1x32xf32, #tpu.memory_space<vmem>>, %arg8: memref<8x32xf32, #tpu.memory_space<vmem>>) attributes {dimension_semantics = [#tpu.dimension_semantics<parallel>], iteration_bounds = array<i64: 1>, scalar_prefetch = 0 : i64, scratch_operands = 0 : i64, tpu.core_type = #tpu.core_type<tc>, window_params = [{transform_indices = @transform_0, window_bounds = array<i64: 8, 4>}, {transform_indices = @transform_1, window_bounds = array<i64: 8, 32>}, {pipeline_mode = #tpu.pipeline_mode<synchronous>, transform_indices = @transform_2, window_bounds = array<i64: 4, 64>}, {pipeline_mode = #tpu.pipeline_mode<synchronous>, transform_indices = @transform_3, window_bounds = array<i64: 32, 64>}, {pipeline_mode = #tpu.pipeline_mode<synchronous>, transform_indices = @transform_4, window_bounds = array<i64: 1, 64>}, {pipeline_mode = #tpu.pipeline_mode<synchronous>, transform_indices = @transform_5, window_bounds = array<i64: 64, 32>}, {pipeline_mode = #tpu.pipeline_mode<synchronous>, transform_indices = @transform_6, window_bounds = array<i64: 1, 32>}, {transform_indices = @transform_7, window_bounds = array<i64: 8, 32>}]} {
    %c0 = arith.constant 0 : index
    %c0_0 = arith.constant 0 : index
    %0 = vector.load %arg1[%c0, %c0_0] : memref<8x4xbf16, #tpu.memory_space<vmem>>, vector<8x4xbf16>
    %c0_1 = arith.constant 0 : index
    %c0_2 = arith.constant 0 : index
    %1 = vector.load %arg2[%c0_1, %c0_2] : memref<8x32xbf16, #tpu.memory_space<vmem>>, vector<8x32xbf16>
    %c0_3 = arith.constant 0 : index
    %c0_4 = arith.constant 0 : index
    %2 = vector.load %arg3[%c0_3, %c0_4] : memref<4x64xbf16, #tpu.memory_space<vmem>>, vector<4x64xbf16>
    %cst = arith.constant dense<0.000000e+00> : vector<8x64xf32>
    %3 = tpu.matmul %0, %2, %cst {dimension_numbers = #tpu.dot_dimension_numbers<[1], [0], [0], [1], [0, 0, 1, 1], [], []>} : vector<8x4xbf16>, vector<4x64xbf16>, vector<8x64xf32> -> vector<8x64xf32>
    %c0_5 = arith.constant 0 : index
    %c0_6 = arith.constant 0 : index
    %4 = vector.load %arg4[%c0_5, %c0_6] : memref<32x64xbf16, #tpu.memory_space<vmem>>, vector<32x64xbf16>
    %cst_7 = arith.constant dense<0.000000e+00> : vector<8x64xf32>
    %5 = tpu.matmul %1, %4, %cst_7 {dimension_numbers = #tpu.dot_dimension_numbers<[1], [0], [0], [1], [0, 0, 1, 1], [], []>} : vector<8x32xbf16>, vector<32x64xbf16>, vector<8x64xf32> -> vector<8x64xf32>
    %6 = arith.addf %3, %5 : vector<8x64xf32>
    %c0_8 = arith.constant 0 : index
    %c0_9 = arith.constant 0 : index
    %7 = vector.load %arg5[%c0_8, %c0_9] : memref<1x64xf32, #tpu.memory_space<vmem>>, vector<1x64xf32>
    %8 = vector.broadcast %7 : vector<1x64xf32> to vector<8x64xf32>
    %9 = arith.addf %6, %8 : vector<8x64xf32>
    %cst_10 = arith.constant 0.000000e+00 : f32
    %10 = vector.broadcast %cst_10 : f32 to vector<8x64xf32>
    %11 = arith.maximumf %9, %10 : vector<8x64xf32>
    %12 = arith.truncf %11 : vector<8x64xf32> to vector<8x64xbf16>
    %c0_11 = arith.constant 0 : index
    %c0_12 = arith.constant 0 : index
    %13 = vector.load %arg6[%c0_11, %c0_12] : memref<64x32xbf16, #tpu.memory_space<vmem>>, vector<64x32xbf16>
    %cst_13 = arith.constant dense<0.000000e+00> : vector<8x32xf32>
    %14 = tpu.matmul %12, %13, %cst_13 {dimension_numbers = #tpu.dot_dimension_numbers<[1], [0], [0], [1], [0, 0, 1, 1], [], []>} : vector<8x64xbf16>, vector<64x32xbf16>, vector<8x32xf32> -> vector<8x32xf32>
    %c0_14 = arith.constant 0 : index
    %c0_15 = arith.constant 0 : index
    %15 = vector.load %arg7[%c0_14, %c0_15] : memref<1x32xf32, #tpu.memory_space<vmem>>, vector<1x32xf32>
    %16 = vector.broadcast %15 : vector<1x32xf32> to vector<8x32xf32>
    %17 = arith.addf %14, %16 : vector<8x32xf32>
    %18 = math.tanh %17 : vector<8x32xf32>
    %c0_16 = arith.constant 0 : index
    %c0_17 = arith.constant 0 : index
    %19 = vector.load %arg8[%c0_16, %c0_17] : memref<8x32xf32, #tpu.memory_space<vmem>>, vector<8x32xf32>
    tpu.vector_store %arg8[%c0_16, %c0_17], %18 {strides = array<i32>} : memref<8x32xf32, #tpu.memory_space<vmem>>, vector<8x32xf32>,
    return
  }
  func.func @transform_0(%arg0: i32) -> (i32, i32) {
    %c0_i32 = arith.constant 0 : i32
    %c0_i32_0 = arith.constant 0 : i32
    return %arg0, %c0_i32 : i32, i32
  }
  func.func @transform_1(%arg0: i32) -> (i32, i32) {
    %c0_i32 = arith.constant 0 : i32
    %c0_i32_0 = arith.constant 0 : i32
    return %arg0, %c0_i32 : i32, i32
  }
  func.func @transform_2(%arg0: i32) -> (i32, i32) {
    %c0_i32 = arith.constant 0 : i32
    %c0_i32_0 = arith.constant 0 : i32
    %c0_i32_1 = arith.constant 0 : i32
    return %c0_i32, %c0_i32_0 : i32, i32
  }
  func.func @transform_3(%arg0: i32) -> (i32, i32) {
    %c0_i32 = arith.constant 0 : i32
    %c0_i32_0 = arith.constant 0 : i32
    %c0_i32_1 = arith.constant 0 : i32
    return %c0_i32, %c0_i32_0 : i32, i32
  }
  func.func @transform_4(%arg0: i32) -> (i32, i32) {
    %c0_i32 = arith.constant 0 : i32
    %c0_i32_0 = arith.constant 0 : i32
    %c0_i32_1 = arith.constant 0 : i32
    return %c0_i32, %c0_i32_0 : i32, i32
  }
  func.func @transform_5(%arg0: i32) -> (i32, i32) {
    %c0_i32 = arith.constant 0 : i32
    %c0_i32_0 = arith.constant 0 : i32
    %c0_i32_1 = arith.constant 0 : i32
    return %c0_i32, %c0_i32_0 : i32, i32
  }
  func.func @transform_6(%arg0: i32) -> (i32, i32) {
    %c0_i32 = arith.constant 0 : i32
    %c0_i32_0 = arith.constant 0 : i32
    %c0_i32_1 = arith.constant 0 : i32
    return %c0_i32, %c0_i32_0 : i32, i32
  }
  func.func @transform_7(%arg0: i32) -> (i32, i32) {
    %c0_i32 = arith.constant 0 : i32
    %c0_i32_0 = arith.constant 0 : i32
    return %arg0, %c0_i32 : i32, i32
  }
}

</mosaic_0001>

<llo_original>
// kernel: readnet_mlp.1
$region0: #{readnet_mlp.1}
  #allocation0 [shape = 'u32[]', space=smem, size = 0x4, offset = 0x4, fixed_abs, tag = 'smem constant byte address 0x4 - core index']
  #allocation1 [shape = 'u32[144,128]{1,0:T(1,128)}', space=vmem, size = 0x12000, scoped, tag = 'internal scratch']
  %s0 = inlined_call_operand.vmem [shape: bf16[8,4], index: 0, kind: input, shape index: {}]
  %s1 = inlined_call_operand.vmem [shape: bf16[8,32], index: 1, kind: input, shape index: {}]
  %s2 = inlined_call_operand.vmem [shape: bf16[4,64], index: 2, kind: input, shape index: {}]
  %s3 = inlined_call_operand.vmem [shape: bf16[32,64], index: 3, kind: input, shape index: {}]
  %s4 = inlined_call_operand.vmem [shape: f32[1,64], index: 4, kind: input, shape index: {}]
  %s5 = inlined_call_operand.vmem [shape: bf16[64,32], index: 5, kind: input, shape index: {}]
  %s6 = inlined_call_operand.vmem [shape: f32[1,32], index: 6, kind: input, shape index: {}]
  %s7 = inlined_call_operand.hbm [shape: f32[8,32], index: 7, kind: output, shape index: {}]
  %s8 = sld [smem:[#allocation0]]
  $region38: #{readnet_mlp.1} parent=0
    _
  %s10 = ssub.s32 1, %s8
  %s11 = scalar_select 0, %s10, %s8
  $region1: #{readnet_mlp.1} parent=0
    #allocation2 [shape = 'u8[4096]{0}', space=vmem, size = 0x1000, scoped, tag = 'output window, operand 0, single buffered']
    #allocation3 [shape = 's32[1]{0}', space=sflag, size = 0x4, scoped, tag = 'scoped memory for readnet_mlp.1']
    %12 = vsyncpa [#allocation3], 0
    // Predicated region
    $region2: #{readnet_mlp.1} parent=1 // pred_check
      _
    $region3: #{readnet_mlp.1} parent=1 // pred_check_branch
      %14 = sbr.rel (0) target = $region5
    $region4: #{readnet_mlp.1} parent=1 // pred_region
      _
    $region5: #{readnet_mlp.1} parent=1 // pred_fallthru
      _
    // Predicated region
    $region6: #{readnet_mlp.1} parent=1 // pred_check
      _
    $region7: #{readnet_mlp.1} parent=1 // pred_check_branch
      %16 = sbr.rel (0) target = $region9
    $region8: #{readnet_mlp.1} parent=1 // pred_region
      _
    $region9: #{readnet_mlp.1} parent=1 // pred_fallthru
      _
    // Predicated region
    $region10: #{readnet_mlp.1} parent=1 // pred_check
      _
    $region11: #{readnet_mlp.1} parent=1 // pred_check_branch
      %18 = sbr.rel (0) target = $region13
    $region12: #{readnet_mlp.1} parent=1 // pred_region
      _
    $region13: #{readnet_mlp.1} parent=1 // pred_fallthru
      _
    // Predicated region
    $region14: #{readnet_mlp.1} parent=1 // pred_check
      _
    $region15: #{readnet_mlp.1} parent=1 // pred_check_branch
      %20 = sbr.rel (0) target = $region17
    $region16: #{readnet_mlp.1} parent=1 // pred_region
      _
    $region17: #{readnet_mlp.1} parent=1 // pred_fallthru
      _
    // Predicated region
    $region18: #{readnet_mlp.1} parent=1 // pred_check
      _
    $region19: #{readnet_mlp.1} parent=1 // pred_check_branch
      %22 = sbr.rel (0) target = $region21
    $region20: #{readnet_mlp.1} parent=1 // pred_region
      _
    $region21: #{readnet_mlp.1} parent=1 // pred_fallthru
      _
    // Predicated region
    $region22: #{readnet_mlp.1} parent=1 // pred_check
      _
    $region23: #{readnet_mlp.1} parent=1 // pred_check_branch
      %24 = sbr.rel (0) target = $region25
    $region24: #{readnet_mlp.1} parent=1 // pred_region
      _
    $region25: #{readnet_mlp.1} parent=1 // pred_fallthru
      _
    // Predicated region
    $region26: #{readnet_mlp.1} parent=1 // pred_check
      _
    $region27: #{readnet_mlp.1} parent=1 // pred_check_branch
      %26 = sbr.rel (0) target = $region29
    $region28: #{readnet_mlp.1} parent=1 // pred_region
      _
    $region29: #{readnet_mlp.1} parent=1 // pred_fallthru
      _
    %v28 = vld [vmem:[%s0] sm:$0xf]
    %v29 = vld [vmem:[%s1] sm:$0xf]
    %v30 = vld [vmem:[%s2] sm:$0x3]
    %v31 = vld [vmem:[%s3] sm:$0xf]
    %v32 = vld [vmem:[%s3 + $0x4] sm:$0xf]
    %v33 = vld [vmem:[%s3 + $0x8] sm:$0xf]
    %v34 = vld [vmem:[%s3 + $0xc] sm:$0xf]
    %v39 = vunpack.c.l.b16 %v31
    %v40 = vunpack.c.l.b16 %v32
    %v41 = vunpack.c.l.b16 %v33
    %v42 = vunpack.c.l.b16 %v34
    %v43 = vpack.c.b16 %v40, %v39
    %v44 = vpack.c.b16 %v42, %v41
    %vm47 = vcmask 261120
    %v49 = vsel %vm47, %v29, 0
    %51 = vmatprep.subr.bf16.mxu0 0
    %52 = vmatpush1.bf16.msra.mxu0 0
    %53 = vmatprep.subr.bf16.mxu0 0
    %54 = vmatpush1.bf16.msra.mxu0 0
    %55 = vmatprep.subr.bf16.mxu0 0
    %56 = vmatpush1.bf16.msra.mxu0 0
    %57 = vmatprep.subr.bf16.mxu0 0
    %58 = vmatpush1.bf16.msra.mxu0 0
    %59 = vmatprep.subr.bf16.mxu0 0
    %60 = vmatpush1.bf16.msra.mxu0 0
    %61 = vmatprep.subr.bf16.mxu0 0
    %62 = vmatpush1.bf16.msra.mxu0 0
    %63 = vmatprep.subr.bf16.mxu0 0
    %64 = vmatpush1.bf16.msra.mxu0 %v44
    %65 = vmatprep.subr.bf16.mxu0 0
    %66 = vmatpush1.bf16.msra.mxu0 %v43
    %67 = vmatprep.subr.bf16.mxu0 0
    %68 = vmatpush2.bf16.msra.mxu0 0
    %69 = vmatprep.subr.bf16.mxu0 0
    %70 = vmatpush2.bf16.msra.mxu0 0
    %71 = vmatprep.subr.bf16.mxu0 0
    %72 = vmatpush2.bf16.msra.mxu0 0
    %73 = vmatprep.subr.bf16.mxu0 0
    %74 = vmatpush2.bf16.msra.mxu0 0
    %75 = vmatprep.subr.bf16.mxu0 0
    %76 = vmatpush2.bf16.msra.mxu0 0
    %77 = vmatprep.subr.bf16.mxu0 0
    %78 = vmatpush2.bf16.msra.mxu0 0
    %79 = vmatprep.subr.bf16.mxu0 0
    %80 = vmatpush2.bf16.msra.mxu0 0
    %81 = vmatprep.subr.bf16.mxu0 0
    %82 = vmatpush2.bf16.msra.mxu0 0
    %83 = vmatprep.mubr.bf16.mxu0 0
    %84 = vmatmul.mubr.bf16.gmra.mxu0 %v49
    %v85 = vpop.f32.mrf.mxu0
    %v86 = vadd.f32 0.0, %v85
    %v87 = vpop.f32.mrf.mxu0
    %v88 = vpop.f32.mrf.mxu0
    %v89 = vpop.f32.mrf.mxu0
    %90 = vdwg.mxu0
    %vm91 = vcmask 31744
    %v93 = vsel %vm91, %v28, 0
    %vm95 = vcmask 1041408
    %v97 = vsel %vm95, %v30, 0
    %99 = vmatprep.subr.bf16.mxu0 0
    %100 = vmatpush1.bf16.msra.mxu0 0
    %101 = vmatprep.subr.bf16.mxu0 0
    %102 = vmatpush1.bf16.msra.mxu0 0
    %103 = vmatprep.subr.bf16.mxu0 0
    %104 = vmatpush1.bf16.msra.mxu0 0
    %105 = vmatprep.subr.bf16.mxu0 0
    %106 = vmatpush1.bf16.msra.mxu0 0
    %107 = vmatprep.subr.bf16.mxu0 0
    %108 = vmatpush1.bf16.msra.mxu0 0
    %109 = vmatprep.subr.bf16.mxu0 0
    %110 = vmatpush1.bf16.msra.mxu0 0
    %111 = vmatprep.subr.bf16.mxu0 0
    %112 = vmatpush1.bf16.msra.mxu0 0
    %113 = vmatprep.subr.bf16.mxu0 0
    %114 = vmatpush1.bf16.msra.mxu0 %v97
    %115 = vmatprep.subr.bf16.mxu0 0
    %116 = vmatpush2.bf16.msra.mxu0 0
    %117 = vmatprep.subr.bf16.mxu0 0
    %118 = vmatpush2.bf16.msra.mxu0 0
    %119 = vmatprep.subr.bf16.mxu0 0
    %120 = vmatpush2.bf16.msra.mxu0 0
    %121 = vmatprep.subr.bf16.mxu0 0
    %122 = vmatpush2.bf16.msra.mxu0 0
    %123 = vmatprep.subr.bf16.mxu0 0
    %124 = vmatpush2.bf16.msra.mxu0 0
    %125 = vmatprep.subr.bf16.mxu0 0
    %126 = vmatpush2.bf16.msra.mxu0 0
    %127 = vmatprep.subr.bf16.mxu0 0
    %128 = vmatpush2.bf16.msra.mxu0 0
    %129 = vmatprep.subr.bf16.mxu0 0
    %130 = vmatpush2.bf16.msra.mxu0 0
    %131 = vmatprep.mubr.bf16.mxu0 0
    %132 = vmatmul.mubr.bf16.gmra.mxu0 %v93
    %v133 = vpop.f32.mrf.mxu0
    %v134 = vadd.f32 %v86, %v133
    %v135 = vpop.f32.mrf.mxu0
    %v136 = vpop.f32.mrf.mxu0
    %v137 = vpop.f32.mrf.mxu0
    %138 = vdwg.mxu0
    %v139 = vld [vmem:[%s4] sm:$0x1]
    %v141 = vlaneseq
    %v142 = vshrl.u32 %v141, 7
    %v143 = vsub.s32 0, %v142
    %v144 = vrot.slane %v139, %v143
    %v146 = vadd.f32 %v134, %v144
    %v147 = vmax.f32 %v146, 0.0
    %v148 = vpack.c.bf16 %v147, %v147
    %v149 = vld [vmem:[%s5] sm:$0xf]
    %v150 = vld [vmem:[%s5 + $0x4] sm:$0xf]
    %v151 = vld [vmem:[%s5 + $0x8] sm:$0xf]
    %v152 = vld [vmem:[%s5 + $0xc] sm:$0xf]
    %v153 = vld [vmem:[%s5 + $0x10] sm:$0xf]
    %v154 = vld [vmem:[%s5 + $0x14] sm:$0xf]
    %v155 = vld [vmem:[%s5 + $0x18] sm:$0xf]
    %v156 = vld [vmem:[%s5 + $0x1c] sm:$0xf]
    %v157 = vld [vmem:[%s6] sm:$0x1]
    %v159 = vlaneseq
    %v160 = vshrl.u32 %v159, 7
    %v161 = vsub.s32 0, %v160
    %v162 = vrot.slane %v157, %v161
    %v172 = vunpack.c.l.b16 %v149
    %v173 = vunpack.c.l.b16 %v150
    %v174 = vunpack.c.l.b16 %v151
    %v175 = vunpack.c.l.b16 %v152
    %v176 = vunpack.c.l.b16 %v153
    %v177 = vunpack.c.l.b16 %v154
    %v178 = vunpack.c.l.b16 %v155
    %v179 = vunpack.c.l.b16 %v156
    %v180 = vpack.c.b16 %v173, %v172
    %v181 = vpack.c.b16 %v175, %v174
    %v182 = vpack.c.b16 %v177, %v176
    %v183 = vpack.c.b16 %v179, %v178
    %vm188 = vcmask 523264
    %v190 = vsel %vm188, %v148, 0
    %192 = vmatprep.subr.bf16.mxu0 0
    %193 = vmatpush1.bf16.msra.mxu0 0
    %194 = vmatprep.subr.bf16.mxu0 0
    %195 = vmatpush1.bf16.msra.mxu0 0
    %196 = vmatprep.subr.bf16.mxu0 0
    %197 = vmatpush1.bf16.msra.mxu0 0
    %198 = vmatprep.subr.bf16.mxu0 0
    %199 = vmatpush1.bf16.msra.mxu0 0
    %200 = vmatprep.subr.bf16.mxu0 0
    %201 = vmatpush1.bf16.msra.mxu0 %v183
    %202 = vmatprep.subr.bf16.mxu0 0
    %203 = vmatpush1.bf16.msra.mxu0 %v182
    %204 = vmatprep.subr.bf16.mxu0 0
    %205 = vmatpush1.bf16.msra.mxu0 %v181
    %206 = vmatprep.subr.bf16.mxu0 0
    %207 = vmatpush1.bf16.msra.mxu0 %v180
    %208 = vmatprep.subr.bf16.mxu0 0
    %209 = vmatpush2.bf16.msra.mxu0 0
    %210 = vmatprep.subr.bf16.mxu0 0
    %211 = vmatpush2.bf16.msra.mxu0 0
    %212 = vmatprep.subr.bf16.mxu0 0
    %213 = vmatpush2.bf16.msra.mxu0 0
    %214 = vmatprep.subr.bf16.mxu0 0
    %215 = vmatpush2.bf16.msra.mxu0 0
    %216 = vmatprep.subr.bf16.mxu0 0
    %217 = vmatpush2.bf16.msra.mxu0 0
    %218 = vmatprep.subr.bf16.mxu0 0
    %219 = vmatpush2.bf16.msra.mxu0 0
    %220 = vmatprep.subr.bf16.mxu0 0
    %221 = vmatpush2.bf16.msra.mxu0 0
    %222 = vmatprep.subr.bf16.mxu0 0
    %223 = vmatpush2.bf16.msra.mxu0 0
    %224 = vmatprep.mubr.bf16.mxu0 0
    %225 = vmatmul.mubr.bf16.gmra.mxu0 %v190
    %v226 = vpop.f32.mrf.mxu0
    %v227 = vadd.f32 %v162, %v226
    %v228 = vpop.f32.mrf.mxu0
    %v229 = vpop.f32.mrf.mxu0
    %v230 = vpop.f32.mrf.mxu0
    %231 = vdwg.mxu0
    %v232 = vtanh.pop %v227
    %233 = vst.msk [vmem:[#allocation2] sm:$0xff] %vm47, %v232
    // Predicated region
    $region30: #{readnet_mlp.1} parent=1 // pred_check
      _
    $region31: #{readnet_mlp.1} parent=1 // pred_check_branch
      %235 = sbr.rel (0) target = $region33
    $region32: #{readnet_mlp.1} parent=1 // pred_region
      %s237 = ssub.s32 128, 128
      %238 = vsyncadd [#allocation3], %s237
      %s240 = sshll.u32 [#allocation2], 4
      %s241 = int_to_ptr.vmem [resolvable:$true] %s240
      %243 = dma.vmem_to_hbm [thread:$0]  %s241, 128, %s7, [#allocation3]
    $region33: #{readnet_mlp.1} parent=1 // pred_fallthru
      _
    // Predicated region
    $region34: #{readnet_mlp.1} parent=1 // pred_check
      _
    $region35: #{readnet_mlp.1} parent=1 // pred_check_branch
      %245 = sbr.rel (0) target = $region37
    $region36: #{readnet_mlp.1} parent=1 // pred_region
      %246 = dma.done [#allocation3], 128
    $region37: #{readnet_mlp.1} parent=1 // pred_fallthru
      _
    %247 = vsyncpa [#allocation3], 1

</llo_original>
